<compile_context>
chip_gen: v7x
topology: tpu7x:2x2x1
jax: 0.10.0
libtpu: 0.0.40
codegen_flags: <defaults>
</compile_context>

<pallas_src>
import jax
import jax.numpy as jnp
from jax import lax
from jax.experimental import pallas as pl
from jax.experimental.pallas import tpu as pltpu


def _mlp_kernel(x_ref, u_ref, c_ref, out_ref):
    # x_ref:  (TB, T*F)  batch rows for this grid step (streamed from HBM)
    # u_ref:  (1, T*F)   folded weight row (resident)
    # c_ref:  (1, 1)     folded bias scalar in SMEM
    # out_ref:(1, TB)    lane-dense per-batch scalars
    acc = lax.dot_general(
        u_ref[...], x_ref[...],
        dimension_numbers=(((1,), (1,)), ((), ())),   # contract the T*F axis
        preferred_element_type=jnp.float32,
    )                                                 # -> (1, TB)
    out_ref[...] = acc + c_ref[0, 0]


def mlp_forward(x, w1, b1, w2, b2, w3, b3, *, tb_max=4096):
    """x: (B, T, F) -> (B,).  Weights stored (in, out); w3 is (T*H, 1)."""
    f32 = jnp.float32
    x = x.astype(f32)
    B, T, F = x.shape
    H = w1.shape[1]
    TF = T * F

    # ---- exact fold of the 3 affine layers (trace-time, tiny) ----
    w1f, w2f = w1.astype(f32), w2.astype(f32)
    w12 = jnp.dot(w1f, w2f)                                   # (F, H)
    b12 = jnp.dot(b1.astype(f32), w2f) + b2.astype(f32)       # (H,)
    w3r = w3.reshape(T, H).astype(f32)                        # (T, H)
    u = jnp.dot(w3r, w12.T).reshape(1, TF)                    # (1, T*F), row-major
    c = (b3.astype(f32).reshape(())
         + jnp.dot(b12, jnp.sum(w3r, axis=0))).reshape(1, 1)  # scalar -> SMEM

    # Free row-major reshape (no HBM copy): flat index t*F + f matches u.
    x2 = x.reshape(B, TF)

    # ---- batch tiling ----
    # Cap TB so one x block (TB, TF) f32 is <= ~4 MiB -> <= ~8 MiB double
    # buffered; safe under default scoped VMEM on v5e/v6e/v7x.
    tb_cap = max(128, ((4 * 1024 * 1024) // (TF * 4)) // 128 * 128)
    tb_cap = min(tb_cap, tb_max)
    if B <= 256:
        TB = B                      # single step; block dims equal full dims
    else:
        # >= 2 roughly balanced steps (both v7x TensorCores); TB multiple of
        # 128 keeps x blocks (8,128)-legal and output blocks lane-dense.
        half = ((B + 1) // 2 + 127) // 128 * 128
        TB = min(tb_cap, half)
    n_steps = pl.cdiv(B, TB)
    B_pad = n_steps * TB            # output over-allocation only; x is NOT padded

    itm = lambda a: a.size * a.dtype.itemsize
    cost = pl.CostEstimate(
        flops=2 * B * TF,
        transcendentals=0,
        bytes_accessed=itm(x2) + itm(u) + B_pad * 4 + 4,
    )

    out = pl.pallas_call(
        _mlp_kernel,
        out_shape=jax.ShapeDtypeStruct((1, B_pad), jnp.float32),
        grid=(n_steps,),
        in_specs=[
            pl.BlockSpec((TB, TF), lambda b: (b, 0)),           # x rows (streamed)
            pl.BlockSpec((1, TF), lambda b: (0, 0)),            # folded weight (resident)
            pl.BlockSpec(memory_space=pltpu.MemorySpace.SMEM),  # folded bias scalar
        ],
        out_specs=pl.BlockSpec((1, TB), lambda b: (0, b)),      # lane-dense scalars
        compiler_params=pltpu.CompilerParams(
            dimension_semantics=("parallel",),
        ),
        cost_estimate=cost,
    )(x2, u, c)

    return jnp.squeeze(out[0, :B])  # mirrors torch .squeeze()


if __name__ == "__main__":
    # Small shapes consistent with the module
    B, T, F, H = 2, 8, 16, 32  # batch, n_timesteps, n_features, n_hidden

    key = jax.random.PRNGKey(0)
    kx, k1, kb1, k2, kb2, k3, kb3, kx2 = jax.random.split(key, 8)

    x = jax.random.normal(kx, (B, T, F), dtype=jnp.float32)

    # Deterministic synthetic parameters (stored as (in, out), i.e. torch W.T)
    w1 = jax.random.normal(k1, (F, H), dtype=jnp.float32) * 0.1
    b1 = jax.random.normal(kb1, (H,), dtype=jnp.float32) * 0.1
    w2 = jax.random.normal(k2, (H, H), dtype=jnp.float32) * 0.1
    b2 = jax.random.normal(kb2, (H,), dtype=jnp.float32) * 0.1
    w3 = jax.random.normal(k3, (T * H, 1), dtype=jnp.float32) * 0.1
    b3 = jax.random.normal(kb3, (1,), dtype=jnp.float32) * 0.1

    def reference(xa):
        bb = xa.shape[0]
        r = xa.reshape(bb * T, F) @ w1 + b1
        r = r @ w2 + b2
        r = r.reshape(bb, T * H) @ w3 + b3
        return jnp.squeeze(r)

    # Small-batch check (single grid step, full-dim blocks)
    out = jax.block_until_ready(mlp_forward(x, w1, b1, w2, b2, w3, b3))
    ref = reference(x)
    assert jnp.allclose(out, ref, atol=1e-4, rtol=1e-4), (out, ref)

    # Larger-batch check (exercises the multi-step, lane-dense (1, TB) path)
    xb = jax.random.normal(kx2, (512, T, F), dtype=jnp.float32)
    out_b = jax.block_until_ready(mlp_forward(xb, w1, b1, w2, b2, w3, b3))
    ref_b = reference(xb)
    assert jnp.allclose(out_b, ref_b, atol=1e-4, rtol=1e-4)

    print("KERNEL_OK")
</pallas_src>

<mosaic_0001>
module attributes {stable_mosaic.version = 11 : i64} {
  func.func @_mlp_kernel(%arg0: i32, %arg1: memref<2x128xf32, #tpu.memory_space<vmem>>, %arg2: memref<1x128xf32, #tpu.memory_space<vmem>>, %arg3: memref<1x1xf32, #tpu.memory_space<smem>>, %arg4: memref<1x2xf32, #tpu.memory_space<vmem>>) attributes {dimension_semantics = [#tpu.dimension_semantics<parallel>], iteration_bounds = array<i64: 1>, scalar_prefetch = 0 : i64, scratch_operands = 0 : i64, tpu.core_type = #tpu.core_type<tc>, window_params = [{transform_indices = @transform_0, window_bounds = array<i64: 2, 128>}, {pipeline_mode = #tpu.pipeline_mode<synchronous>, transform_indices = @transform_1, window_bounds = array<i64: 1, 128>}, {transform_indices = @transform_2, window_bounds = array<i64: 1, 1>}, {transform_indices = @transform_3, window_bounds = array<i64: 1, 2>}]} {
    %c0 = arith.constant 0 : index
    %c0_0 = arith.constant 0 : index
    %0 = vector.load %arg2[%c0, %c0_0] : memref<1x128xf32, #tpu.memory_space<vmem>>, vector<1x128xf32>
    %c0_1 = arith.constant 0 : index
    %c0_2 = arith.constant 0 : index
    %1 = vector.load %arg1[%c0_1, %c0_2] : memref<2x128xf32, #tpu.memory_space<vmem>>, vector<2x128xf32>
    %cst = arith.constant dense<0.000000e+00> : vector<1x2xf32>
    %2 = tpu.matmul %0, %1, %cst {dimension_numbers = #tpu.dot_dimension_numbers<[1], [1], [0], [0], [0, 0, 1, 0], [], []>} : vector<1x128xf32>, vector<2x128xf32>, vector<1x2xf32> -> vector<1x2xf32>
    %c0_3 = arith.constant 0 : index
    %c0_4 = arith.constant 0 : index
    %3 = memref.load %arg3[%c0_3, %c0_4] : memref<1x1xf32, #tpu.memory_space<smem>>
    %4 = vector.broadcast %3 : f32 to vector<1x2xf32>
    %5 = arith.addf %2, %4 : vector<1x2xf32>
    %c0_5 = arith.constant 0 : index
    %c0_6 = arith.constant 0 : index
    %6 = vector.load %arg4[%c0_5, %c0_6] : memref<1x2xf32, #tpu.memory_space<vmem>>, vector<1x2xf32>
    tpu.vector_store %arg4[%c0_5, %c0_6], %5 {strides = array<i32>} : memref<1x2xf32, #tpu.memory_space<vmem>>, vector<1x2xf32>,
    return
  }
  func.func @transform_0(%arg0: i32) -> (i32, i32) {
    %c0_i32 = arith.constant 0 : i32
    %c0_i32_0 = arith.constant 0 : i32
    return %arg0, %c0_i32 : i32, i32
  }
  func.func @transform_1(%arg0: i32) -> (i32, i32) {
    %c0_i32 = arith.constant 0 : i32
    %c0_i32_0 = arith.constant 0 : i32
    %c0_i32_1 = arith.constant 0 : i32
    return %c0_i32, %c0_i32_0 : i32, i32
  }
  func.func @transform_2(%arg0: i32) -> (i32, i32) {
    %c0_i32 = arith.constant 0 : i32
    %c0_i32_0 = arith.constant 0 : i32
    %c0_i32_1 = arith.constant 0 : i32
    return %c0_i32, %c0_i32_0 : i32, i32
  }
  func.func @transform_3(%arg0: i32) -> (i32, i32) {
    %c0_i32 = arith.constant 0 : i32
    %c0_i32_0 = arith.constant 0 : i32
    return %c0_i32, %arg0 : i32, i32
  }
}

</mosaic_0001>

<llo_original>
// kernel: tpu_custom_call.1
$region0: #{tpu_custom_call.1}
  #allocation0 [shape = 'u32[]', space=smem, size = 0x4, offset = 0x4, fixed_abs, tag = 'smem constant byte address 0x4 - core index']
  #allocation1 [shape = 'u32[144,128]{1,0:T(1,128)}', space=vmem, size = 0x12000, scoped, tag = 'internal scratch']
  #allocation2 [shape = 'f32[1,1]{1,0:T(1,128)S(6)}', space=smem, size = 0x200, scoped, tag = 'scoped memory for tpu_custom_call.1']
  %s0 = inlined_call_operand.vmem [shape: f32[2,128], index: 0, kind: input, shape index: {}]
  %s1 = inlined_call_operand.vmem [shape: f32[1,128], index: 1, kind: input, shape index: {}]
  %s2 = inlined_call_operand.<no memory space> [shape: f32[1,1], index: 2, kind: input, shape index: {}]
  %s3 = inlined_call_operand.hbm [shape: f32[1,2], index: 3, kind: output, shape index: {}]
  %s4 = sld [smem:[#allocation0]]
  $region22: #{tpu_custom_call.1} parent=0
    _
  %s6 = ssub.s32 1, %s4
  %s7 = scalar_select 0, %s6, %s4
  %8 = sst [smem:[#allocation2]] %s2
  $region1: #{tpu_custom_call.1} parent=0
    #allocation3 [shape = 'u8[512]{0}', space=vmem, size = 0x400, scoped, tag = 'output window, operand 0, single buffered']
    #allocation4 [shape = 's32[1]{0}', space=sflag, size = 0x4, scoped, tag = 'scoped memory for tpu_custom_call.1']
    %9 = vsyncpa [#allocation4], 0
    // Predicated region
    $region2: #{tpu_custom_call.1} parent=1 // pred_check
      _
    $region3: #{tpu_custom_call.1} parent=1 // pred_check_branch
      %11 = sbr.rel (0) target = $region5
    $region4: #{tpu_custom_call.1} parent=1 // pred_region
      _
    $region5: #{tpu_custom_call.1} parent=1 // pred_fallthru
      _
    // Predicated region
    $region6: #{tpu_custom_call.1} parent=1 // pred_check
      _
    $region7: #{tpu_custom_call.1} parent=1 // pred_check_branch
      %13 = sbr.rel (0) target = $region9
    $region8: #{tpu_custom_call.1} parent=1 // pred_region
      _
    $region9: #{tpu_custom_call.1} parent=1 // pred_fallthru
      _
    // Predicated region
    $region10: #{tpu_custom_call.1} parent=1 // pred_check
      _
    $region11: #{tpu_custom_call.1} parent=1 // pred_check_branch
      %15 = sbr.rel (0) target = $region13
    $region12: #{tpu_custom_call.1} parent=1 // pred_region
      _
    $region13: #{tpu_custom_call.1} parent=1 // pred_fallthru
      _
    %v16 = vld [vmem:[%s1] sm:$0x1]
    %v17 = vld [vmem:[%s0] sm:$0x3]
    %s18 = sld [smem:[#allocation2]]
    %v19 = vstv %s18
    %20 = vmatprep.subr.mxu0 0.0
    %21 = vmatpush1.xpose.msra.mxu0 %v17
    %22 = vmatprep.subr.mxu0 0.0
    %23 = vmatpush1.xpose.msra.mxu0 0.0
    %24 = vmatprep.subr.mxu0 0.0
    %25 = vmatpush1.xpose.msra.mxu0 0.0
    %26 = vmatprep.subr.mxu0 0.0
    %27 = vmatpush1.xpose.msra.mxu0 0.0
    %28 = vmatprep.subr.mxu0 0.0
    %29 = vmatpush1.xpose.msra.mxu0 0.0
    %30 = vmatprep.subr.mxu0 0.0
    %31 = vmatpush1.xpose.msra.mxu0 0.0
    %32 = vmatprep.subr.mxu0 0.0
    %33 = vmatpush1.xpose.msra.mxu0 0.0
    %34 = vmatprep.subr.mxu0 0.0
    %35 = vmatpush1.xpose.msra.mxu0 0.0
    %36 = vmatprep.subr.mxu0 0.0
    %37 = vmatpush1.xpose.msra.mxu0 0.0
    %38 = vmatprep.subr.mxu0 0.0
    %39 = vmatpush1.xpose.msra.mxu0 0.0
    %40 = vmatprep.subr.mxu0 0.0
    %41 = vmatpush1.xpose.msra.mxu0 0.0
    %42 = vmatprep.subr.mxu0 0.0
    %43 = vmatpush1.xpose.msra.mxu0 0.0
    %44 = vmatprep.subr.mxu0 0.0
    %45 = vmatpush1.xpose.msra.mxu0 0.0
    %46 = vmatprep.subr.mxu0 0.0
    %47 = vmatpush1.xpose.msra.mxu0 0.0
    %48 = vmatprep.subr.mxu0 0.0
    %49 = vmatpush1.xpose.msra.mxu0 0.0
    %50 = vmatprep.subr.mxu0 0.0
    %51 = vmatpush1.xpose.msra.mxu0 0.0
    %52 = vmatprep.subr.mxu0 0.0
    %53 = vmatpush1.xpose.msra.mxu0 0.0
    %54 = vmatprep.subr.mxu0 0.0
    %55 = vmatpush1.xpose.msra.mxu0 0.0
    %56 = vmatprep.subr.mxu0 0.0
    %57 = vmatpush1.xpose.msra.mxu0 0.0
    %58 = vmatprep.subr.mxu0 0.0
    %59 = vmatpush1.xpose.msra.mxu0 0.0
    %60 = vmatprep.subr.mxu0 0.0
    %61 = vmatpush1.xpose.msra.mxu0 0.0
    %62 = vmatprep.subr.mxu0 0.0
    %63 = vmatpush1.xpose.msra.mxu0 0.0
    %64 = vmatprep.subr.mxu0 0.0
    %65 = vmatpush1.xpose.msra.mxu0 0.0
    %66 = vmatprep.subr.mxu0 0.0
    %67 = vmatpush1.xpose.msra.mxu0 0.0
    %68 = vmatprep.subr.mxu0 0.0
    %69 = vmatpush1.xpose.msra.mxu0 0.0
    %70 = vmatprep.subr.mxu0 0.0
    %71 = vmatpush1.xpose.msra.mxu0 0.0
    %72 = vmatprep.subr.mxu0 0.0
    %73 = vmatpush1.xpose.msra.mxu0 0.0
    %74 = vmatprep.subr.mxu0 0.0
    %75 = vmatpush1.xpose.msra.mxu0 0.0
    %76 = vmatprep.subr.mxu0 0.0
    %77 = vmatpush1.xpose.msra.mxu0 0.0
    %78 = vmatprep.subr.mxu0 0.0
    %79 = vmatpush1.xpose.msra.mxu0 0.0
    %80 = vmatprep.subr.mxu0 0.0
    %81 = vmatpush1.xpose.msra.mxu0 0.0
    %82 = vmatprep.subr.mxu0 0.0
    %83 = vmatpush1.xpose.msra.mxu0 0.0
    %84 = vmatprep.mubr.f32.mxu0 0.0
    %85 = vmatmul.mubr.f32.gmra.mrb[0].mxu0 %v16
    %v86 = vpop.f32.mrb[0].mxu0
    %v87 = vadd.f32 %v19, %v86
    %v88 = vpop.f32.mrb[0].mxu0
    %89 = vdwg.mxu0
    %vm90 = vcmask 8192
    %91 = vst.msk [vmem:[#allocation3] sm:$0x1] %vm90, %v87
    // Predicated region
    $region14: #{tpu_custom_call.1} parent=1 // pred_check
      _
    $region15: #{tpu_custom_call.1} parent=1 // pred_check_branch
      %93 = sbr.rel (0) target = $region17
    $region16: #{tpu_custom_call.1} parent=1 // pred_region
      %s95 = ssub.s32 16, 16
      %96 = vsyncadd [#allocation4], %s95
      %s98 = sshll.u32 [#allocation3], 4
      %s99 = int_to_ptr.vmem [resolvable:$true] %s98
      %101 = dma.vmem_to_hbm [thread:$0]  %s99, 16, %s3, [#allocation4]
    $region17: #{tpu_custom_call.1} parent=1 // pred_fallthru
      _
    // Predicated region
    $region18: #{tpu_custom_call.1} parent=1 // pred_check
      _
    $region19: #{tpu_custom_call.1} parent=1 // pred_check_branch
      %103 = sbr.rel (0) target = $region21
    $region20: #{tpu_custom_call.1} parent=1 // pred_region
      %104 = dma.done [#allocation4], 16
    $region21: #{tpu_custom_call.1} parent=1 // pred_fallthru
      _
    %105 = vsyncpa [#allocation4], 1

</llo_original>
